<compile_context>
chip_gen: v5e
topology: v5e:2x2
jax: 0.10.0
libtpu: 0.0.40
codegen_flags: <defaults>
</compile_context>

<pallas_src>
import functools

import jax
import jax.numpy as jnp
from jax.experimental import pallas as pl
from jax.experimental.pallas import tpu as pltpu

# ----------------------------- small CLIP config -----------------------------
IMG = 16          # image_size
PATCH = 8         # patch_size
CHANS = 3         # in channels
HIDDEN = 32       # hidden_size
HEADS = 4         # num_attention_heads
INTER = 64        # intermediate_size
LAYERS = 2        # num_hidden_layers
SELECT_LAYER = -2        # args.mm_vision_select_layer
SELECT_FEATURE = "patch"  # args.mm_vision_select_feature
LN_EPS = 1e-5

NUM_PATCHES = (IMG // PATCH) ** 2   # 4
SEQ = NUM_PATCHES + 1               # 5 (CLS + patches)
KDIM = CHANS * PATCH * PATCH        # 192 (im2col width)
HEAD_DIM = HIDDEN // HEADS          # 8


def _layernorm(x, g, b, eps=LN_EPS):
    # One pass: two independent reductions (overlap in the XLU slot),
    # var = E[x^2] - E[x]^2  (biased variance, same as torch LayerNorm).
    mean = jnp.mean(x, axis=-1, keepdims=True)
    meansq = jnp.mean(x * x, axis=-1, keepdims=True)
    var = meansq - mean * mean
    return (x - mean) * jax.lax.rsqrt(var + eps) * g + b


# ------------------------------ Pallas kernel --------------------------------
def _encoder_layer(x, w_qkv, wo, w1, w2, vecs, b1, head_mask, *, num_heads, bb, seq):
    """One CLIP encoder layer (pre-LN MHA + pre-LN quick-GELU MLP, residuals).

    x:         (BB*S, D) f32 flattened activation slab
    w_qkv:     (D, 3D)  = [Wq | Wk | Wv]   (stored as (in, out))
    wo:        (D, D)
    w1:        (D, INTER), w2: (INTER, D)
    vecs:      (9, D)   rows: ln1_g, ln1_b, bq, bk, bv, b_o, ln2_g, ln2_b, b_fc2
    b1:        (1, INTER)
    head_mask: (H*S, D) static mask, row block h keeps head h's columns
    """
    d = x.shape[-1]
    hd = d // num_heads
    scale = float(hd) ** -0.5

    ln1_g, ln1_b = vecs[0:1, :], vecs[1:2, :]
    bq, bk, bv = vecs[2:3, :], vecs[3:4, :], vecs[4:5, :]
    bo = vecs[5:6, :]
    ln2_g, ln2_b = vecs[6:7, :], vecs[7:8, :]
    b2 = vecs[8:9, :]

    # ---- pre-LN multi-head self-attention (head-batched, no per-head loop) ----
    h = _layernorm(x, ln1_g, ln1_b)                                   # (BB*S, D)
    qkv = jnp.dot(h, w_qkv, preferred_element_type=jnp.float32)       # (BB*S, 3D)
    q = (qkv[:, :d] + bq) * scale
    k = qkv[:, d:2 * d] + bk
    v = qkv[:, 2 * d:3 * d] + bv

    q3 = q.reshape(bb, seq, d)
    k3 = k.reshape(bb, seq, d)
    v3 = v.reshape(bb, seq, d)

    # Block-diagonal Q stack (BB, H*S, D): row h*S+s holds q[s] restricted to
    # head h's columns, so one batched matmul against full-width K yields all
    # per-head score tiles stacked along sublanes.
    q_bd = jnp.tile(q3, (1, num_heads, 1)) * head_mask[None]
    s = jnp.einsum('bqd,bkd->bqk', q_bd, k3,
                   preferred_element_type=jnp.float32)                # (BB, H*S, S)
    s = s - jnp.max(s, axis=-1, keepdims=True)
    p = jnp.exp(s)
    p = p / jnp.sum(p, axis=-1, keepdims=True)   # exact divide (parity w/ torch)

    ctx = jnp.einsum('bqk,bkd->bqd', p, v3,
                     preferred_element_type=jnp.float32)              # (BB, H*S, D)
    ctx = ctx * head_mask[None]                  # keep head h's columns in block h
    # Sum the H stacked blocks: each head's context lands in its own column
    # slice ("concat heads") without any lane concatenation.
    ctx_cat = ctx[:, 0:seq, :]
    for hh in range(1, num_heads):
        ctx_cat = ctx_cat + ctx[:, hh * seq:(hh + 1) * seq, :]
    ctx_cat = ctx_cat.reshape(bb * seq, d)

    attn = jnp.dot(ctx_cat, wo, preferred_element_type=jnp.float32) + bo
    x = x + attn

    # ---- pre-LN MLP block (quick_gelu, as in original CLIP) ----
    h2 = _layernorm(x, ln2_g, ln2_b)
    f = jnp.dot(h2, w1, preferred_element_type=jnp.float32) + b1
    f = f * jax.nn.sigmoid(1.702 * f)
    f = jnp.dot(f, w2, preferred_element_type=jnp.float32) + b2
    return x + f


def fused_forward_kernel(*refs, num_heads, layers_to_run, drop_cls):
    """Entire CLIPVisionTower forward for a block of BB images per grid step.

    refs = (patches, patch_w, pos_cls, preln, [w_qkv, wo, w1, w2, vecs, b1], out)
      patches : (BB, S, K)  im2col patches; row 0 of each image is all-zero (CLS slot)
      patch_w : (K, D)      conv weight flattened (c, ph, pw) -> D
      pos_cls : (S, D)      position embeddings with CLS folded into row 0
      preln   : (2, D)      pre_layernorm gamma / beta
      w_qkv.. : per-layer weights stacked along a leading layer axis
      out     : (BB, n_rows, D)  selected feature block
    """
    patches_ref, patch_w_ref, pos_cls_ref, preln_ref = refs[:4]
    out_ref = refs[-1]

    bb, seq, kdim = patches_ref.shape
    d = patch_w_ref.shape[-1]

    # Patch embedding + CLS + position embedding in one matmul + add
    # (no concatenate: the zero row 0 of `patches` is the CLS slot).
    patches = patches_ref[...].reshape(bb * seq, kdim)
    x = jnp.dot(patches, patch_w_ref[...], preferred_element_type=jnp.float32)
    x = x + jnp.tile(pos_cls_ref[...], (bb, 1))                        # (BB*S, D)

    preln = preln_ref[...]
    x = _layernorm(x, preln[0:1, :], preln[1:2, :])                    # hidden_states[0]

    if layers_to_run > 0:
        w_qkv_ref, wo_ref, w1_ref, w2_ref, vecs_ref, b1_ref = refs[4:10]
        hd = d // num_heads
        # Static per-head column mask, built once per grid step (no integer div).
        lane = jax.lax.broadcasted_iota(jnp.int32, (seq, d), 1)        # (S, D)
        head_mask = jnp.concatenate(
            [((lane >= h * hd) & (lane < (h + 1) * hd)).astype(jnp.float32)
             for h in range(num_heads)], axis=0)                       # (H*S, D)

        # Only the layers whose output is consumed by select_layer are run.
        for l in range(layers_to_run):
            x = _encoder_layer(x, w_qkv_ref[l], wo_ref[l], w1_ref[l], w2_ref[l],
                               vecs_ref[l], b1_ref[l], head_mask,
                               num_heads=num_heads, bb=bb, seq=seq)

    start = 1 if drop_cls else 0
    x3 = x.reshape(bb, seq, d)
    out_ref[...] = x3[:, start:, :].astype(out_ref.dtype)


# ------------------------------- JAX wrapper ---------------------------------
def _stack_layers(layer_params):
    """Stack the per-layer tensors along a leading layer axis (few wide args)."""
    def cat_qkv(lp):
        return jnp.concatenate([lp[2], lp[4], lp[6]], axis=-1)          # (D, 3D)

    def cat_vecs(lp):
        # rows: ln1_g, ln1_b, bq, bk, bv, b_o, ln2_g, ln2_b, b_fc2
        return jnp.concatenate(
            [lp[0], lp[1], lp[3], lp[5], lp[7], lp[9], lp[10], lp[11], lp[15]],
            axis=0)                                                      # (9, D)

    w_qkv = jnp.stack([cat_qkv(lp) for lp in layer_params], axis=0)     # (L, D, 3D)
    wo = jnp.stack([lp[8] for lp in layer_params], axis=0)              # (L, D, D)
    w1 = jnp.stack([lp[12] for lp in layer_params], axis=0)             # (L, D, INTER)
    w2 = jnp.stack([lp[14] for lp in layer_params], axis=0)             # (L, INTER, D)
    vecs = jnp.stack([cat_vecs(lp) for lp in layer_params], axis=0)     # (L, 9, D)
    b1 = jnp.stack([lp[13] for lp in layer_params], axis=0)             # (L, 1, INTER)
    return [w_qkv, wo, w1, w2, vecs, b1]


def clip_vision_tower_forward(images, params,
                              select_layer=SELECT_LAYER,
                              select_feature=SELECT_FEATURE):
    """Equivalent of CLIPVisionTower.forward for a batched image tensor."""
    if select_feature == "patch":
        drop_cls = True
    elif select_feature == "cls_patch":
        drop_cls = False
    else:
        raise ValueError(f"Unexpected select feature: {select_feature}")

    # hidden_states has LAYERS+1 entries; entry i needs exactly i encoder layers.
    n_hidden = LAYERS + 1
    if not (-n_hidden <= select_layer < n_hidden):
        raise ValueError(f"select_layer={select_layer} out of range for "
                         f"{LAYERS} encoder layers")
    layers_to_run = select_layer % n_hidden

    orig_dtype = images.dtype
    x32 = images.astype(jnp.float32)
    B, C, H, W = x32.shape
    P = PATCH

    # im2col glue: (B, C, H, W) -> (B, N, C*P*P), patch vector ordered (c, ph, pw);
    # prepend a zero row so the CLS slot falls out of the same matmul.
    # TODO(synk): Conv2d patch extraction is done as XLA reshape/transpose glue here.
    patches = x32.reshape(B, C, H // P, P, W // P, P)
    patches = patches.transpose(0, 2, 4, 1, 3, 5).reshape(B, NUM_PATCHES, KDIM)
    patches_ext = jnp.concatenate(
        [jnp.zeros((B, 1, KDIM), jnp.float32), patches], axis=1)        # (B, S, K)

    # Batch-block the grid: >=2 parallel steps when possible (feeds both TCs on
    # v7x); each step processes BB images as one flattened (BB*S, D) slab.
    num_blocks = 2 if B >= 2 else 1
    bb = -(-B // num_blocks)
    b_pad = num_blocks * bb
    if b_pad != B:
        patches_ext = jnp.concatenate(
            [patches_ext, jnp.zeros((b_pad - B, SEQ, KDIM), jnp.float32)], axis=0)

    # Pack parameters (tiny, one-time glue outside the kernel).
    pos_cls = jnp.concatenate(
        [params["pos"][0:1] + params["cls"], params["pos"][1:]], axis=0)       # (S, D)
    preln = jnp.concatenate([params["pre_ln_g"], params["pre_ln_b"]], axis=0)  # (2, D)
    layer_inputs = (_stack_layers(params["layers"][:layers_to_run])
                    if layers_to_run > 0 else [])

    n_rows = NUM_PATCHES if drop_cls else SEQ
    inputs = [patches_ext, params["patch_w"], pos_cls, preln] + layer_inputs

    in_specs = [pl.BlockSpec((bb, SEQ, KDIM), lambda b: (b, 0, 0))]
    for arr in inputs[1:]:
        in_specs.append(pl.BlockSpec(arr.shape, lambda b, _nd=arr.ndim: (0,) * _nd))

    feat = pl.pallas_call(
        functools.partial(fused_forward_kernel, num_heads=HEADS,
                          layers_to_run=layers_to_run, drop_cls=drop_cls),
        out_shape=jax.ShapeDtypeStruct((b_pad, n_rows, HIDDEN), orig_dtype),
        grid=(num_blocks,),
        in_specs=in_specs,
        out_specs=pl.BlockSpec((bb, n_rows, HIDDEN), lambda b: (b, 0, 0)),
        compiler_params=pltpu.CompilerParams(
            dimension_semantics=("parallel",)),
    )(*inputs)

    return feat[:B]


# ---------------------------- deterministic params ----------------------------
def init_params(key):
    keys = jax.random.split(key, 4 + 12 * LAYERS)
    ki = iter(range(len(keys)))
    std = 0.02

    def nrm(shape):
        return std * jax.random.normal(keys[next(ki)], shape, dtype=jnp.float32)

    params = {
        # conv weight (D, C, P, P) flattened to (K, D) with K ordered (c, ph, pw)
        "patch_w": nrm((KDIM, HIDDEN)),
        "cls": nrm((1, HIDDEN)),
        "pos": nrm((SEQ, HIDDEN)),
        "pre_ln_g": jnp.ones((1, HIDDEN), jnp.float32),
        "pre_ln_b": jnp.zeros((1, HIDDEN), jnp.float32),
        "layers": [],
    }
    next(ki)  # burn one key so layer keys differ from embed keys deterministically
    for _ in range(LAYERS):
        lp = (
            jnp.ones((1, HIDDEN), jnp.float32),   # 0  ln1 gamma
            jnp.zeros((1, HIDDEN), jnp.float32),  # 1  ln1 beta
            nrm((HIDDEN, HIDDEN)), nrm((1, HIDDEN)),   # 2,3   Wq, bq
            nrm((HIDDEN, HIDDEN)), nrm((1, HIDDEN)),   # 4,5   Wk, bk
            nrm((HIDDEN, HIDDEN)), nrm((1, HIDDEN)),   # 6,7   Wv, bv
            nrm((HIDDEN, HIDDEN)), nrm((1, HIDDEN)),   # 8,9   Wo, bo
            jnp.ones((1, HIDDEN), jnp.float32),   # 10 ln2 gamma
            jnp.zeros((1, HIDDEN), jnp.float32),  # 11 ln2 beta
            nrm((HIDDEN, INTER)), nrm((1, INTER)),     # 12,13 fc1
            nrm((INTER, HIDDEN)), nrm((1, HIDDEN)),    # 14,15 fc2
        )
        params["layers"].append(lp)
    return params


if __name__ == "__main__":
    key = jax.random.PRNGKey(0)
    pkey, xkey = jax.random.split(key)
    params = init_params(pkey)

    B = 2
    images = jax.random.normal(xkey, (B, CHANS, IMG, IMG), dtype=jnp.float32)

    feats = clip_vision_tower_forward(images, params)
    feats = jax.block_until_ready(feats)

    assert feats.shape == (B, NUM_PATCHES, HIDDEN), feats.shape
    assert feats.dtype == images.dtype
    assert bool(jnp.all(jnp.isfinite(feats)))
    print("KERNEL_OK")
</pallas_src>

<mosaic_0001>
module attributes {stable_mosaic.version = 11 : i64} {
  func.func @fused_forward_kernel(%arg0: i32, %arg1: memref<1x5x192xf32, #tpu.memory_space<vmem>>, %arg2: memref<192x32xf32, #tpu.memory_space<vmem>>, %arg3: memref<5x32xf32, #tpu.memory_space<vmem>>, %arg4: memref<2x32xf32, #tpu.memory_space<vmem>>, %arg5: memref<1x32x96xf32, #tpu.memory_space<vmem>>, %arg6: memref<1x32x32xf32, #tpu.memory_space<vmem>>, %arg7: memref<1x32x64xf32, #tpu.memory_space<vmem>>, %arg8: memref<1x64x32xf32, #tpu.memory_space<vmem>>, %arg9: memref<1x9x32xf32, #tpu.memory_space<vmem>>, %arg10: memref<1x1x64xf32, #tpu.memory_space<vmem>>, %arg11: memref<1x4x32xf32, #tpu.memory_space<vmem>>) attributes {dimension_semantics = [#tpu.dimension_semantics<parallel>], iteration_bounds = array<i64: 2>, scalar_prefetch = 0 : i64, scratch_operands = 0 : i64, tpu.core_type = #tpu.core_type<tc>, window_params = [{transform_indices = @transform_0, window_bounds = array<i64: 1, 5, 192>}, {pipeline_mode = #tpu.pipeline_mode<synchronous>, transform_indices = @transform_1, window_bounds = array<i64: 192, 32>}, {pipeline_mode = #tpu.pipeline_mode<synchronous>, transform_indices = @transform_2, window_bounds = array<i64: 5, 32>}, {pipeline_mode = #tpu.pipeline_mode<synchronous>, transform_indices = @transform_3, window_bounds = array<i64: 2, 32>}, {pipeline_mode = #tpu.pipeline_mode<synchronous>, transform_indices = @transform_4, window_bounds = array<i64: 1, 32, 96>}, {pipeline_mode = #tpu.pipeline_mode<synchronous>, transform_indices = @transform_5, window_bounds = array<i64: 1, 32, 32>}, {pipeline_mode = #tpu.pipeline_mode<synchronous>, transform_indices = @transform_6, window_bounds = array<i64: 1, 32, 64>}, {pipeline_mode = #tpu.pipeline_mode<synchronous>, transform_indices = @transform_7, window_bounds = array<i64: 1, 64, 32>}, {pipeline_mode = #tpu.pipeline_mode<synchronous>, transform_indices = @transform_8, window_bounds = array<i64: 1, 9, 32>}, {pipeline_mode = #tpu.pipeline_mode<synchronous>, transform_indices = @transform_9, window_bounds = array<i64: 1, 1, 64>}, {transform_indices = @transform_10, window_bounds = array<i64: 1, 4, 32>}]} {
    %c0 = arith.constant 0 : index
    %c0_0 = arith.constant 0 : index
    %c0_1 = arith.constant 0 : index
    %0 = vector.load %arg1[%c0, %c0_0, %c0_1] : memref<1x5x192xf32, #tpu.memory_space<vmem>>, vector<1x5x192xf32>
    %1 = vector.shape_cast %0 : vector<1x5x192xf32> to vector<5x192xf32>
    %c0_2 = arith.constant 0 : index
    %c0_3 = arith.constant 0 : index
    %2 = vector.load %arg2[%c0_2, %c0_3] : memref<192x32xf32, #tpu.memory_space<vmem>>, vector<192x32xf32>
    %cst = arith.constant dense<0.000000e+00> : vector<5x32xf32>
    %3 = tpu.matmul %1, %2, %cst {dimension_numbers = #tpu.dot_dimension_numbers<[1], [0], [0], [1], [0, 0, 1, 1], [], []>} : vector<5x192xf32>, vector<192x32xf32>, vector<5x32xf32> -> vector<5x32xf32>
    %c0_4 = arith.constant 0 : index
    %c0_5 = arith.constant 0 : index
    %4 = vector.load %arg3[%c0_4, %c0_5] : memref<5x32xf32, #tpu.memory_space<vmem>>, vector<5x32xf32>
    %5 = arith.addf %3, %4 : vector<5x32xf32>
    %c0_6 = arith.constant 0 : index
    %c0_7 = arith.constant 0 : index
    %6 = vector.load %arg4[%c0_6, %c0_7] : memref<2x32xf32, #tpu.memory_space<vmem>>, vector<2x32xf32>
    %7 = vector.extract_strided_slice %6 {offsets = [0, 0], sizes = [1, 32], strides = [1, 1]} : vector<2x32xf32> to vector<1x32xf32>
    %8 = vector.extract_strided_slice %6 {offsets = [1, 0], sizes = [1, 32], strides = [1, 1]} : vector<2x32xf32> to vector<1x32xf32>
    %cst_8 = arith.constant dense<0.000000e+00> : vector<5xf32>
    %9 = vector.multi_reduction <add>, %5, %cst_8 [1] : vector<5x32xf32> to vector<5xf32>
    %10 = vector.shape_cast %9 : vector<5xf32> to vector<5x1xf32>
    %cst_9 = arith.constant 3.200000e+01 : f32
    %11 = vector.broadcast %cst_9 : f32 to vector<5x1xf32>
    %12 = arith.divf %10, %11 : vector<5x1xf32>
    %13 = arith.mulf %5, %5 : vector<5x32xf32>
    %cst_10 = arith.constant dense<0.000000e+00> : vector<5xf32>
    %14 = vector.multi_reduction <add>, %13, %cst_10 [1] : vector<5x32xf32> to vector<5xf32>
    %15 = vector.shape_cast %14 : vector<5xf32> to vector<5x1xf32>
    %cst_11 = arith.constant 3.200000e+01 : f32
    %16 = vector.broadcast %cst_11 : f32 to vector<5x1xf32>
    %17 = arith.divf %15, %16 : vector<5x1xf32>
    %18 = arith.mulf %12, %12 : vector<5x1xf32>
    %19 = arith.subf %17, %18 : vector<5x1xf32>
    %20 = vector.broadcast %12 : vector<5x1xf32> to vector<5x32xf32>
    %21 = arith.subf %5, %20 : vector<5x32xf32>
    %cst_12 = arith.constant 9.99999974E-6 : f32
    %22 = vector.broadcast %cst_12 : f32 to vector<5x1xf32>
    %23 = arith.addf %19, %22 : vector<5x1xf32>
    %24 = math.rsqrt %23 : vector<5x1xf32>
    %25 = vector.broadcast %24 : vector<5x1xf32> to vector<5x32xf32>
    %26 = arith.mulf %21, %25 : vector<5x32xf32>
    %27 = vector.broadcast %7 : vector<1x32xf32> to vector<5x32xf32>
    %28 = arith.mulf %26, %27 : vector<5x32xf32>
    %29 = vector.broadcast %8 : vector<1x32xf32> to vector<5x32xf32>
    %30 = arith.addf %28, %29 : vector<5x32xf32>
    %31 = tpu.iota {dimensions = array<i32: 1>} : vector<5x32xi32>
    %c0_i32 = arith.constant 0 : i32
    %32 = vector.broadcast %c0_i32 : i32 to vector<5x32xi32>
    %33 = arith.cmpi sge, %31, %32 : vector<5x32xi32>
    %c8_i32 = arith.constant 8 : i32
    %34 = vector.broadcast %c8_i32 : i32 to vector<5x32xi32>
    %35 = arith.cmpi slt, %31, %34 : vector<5x32xi32>
    %36 = arith.andi %33, %35 : vector<5x32xi1>
    %37 = arith.extui %36 : vector<5x32xi1> to vector<5x32xi32>
    %38 = arith.sitofp %37 : vector<5x32xi32> to vector<5x32xf32>
    %c8_i32_13 = arith.constant 8 : i32
    %39 = vector.broadcast %c8_i32_13 : i32 to vector<5x32xi32>
    %40 = arith.cmpi sge, %31, %39 : vector<5x32xi32>
    %c16_i32 = arith.constant 16 : i32
    %41 = vector.broadcast %c16_i32 : i32 to vector<5x32xi32>
    %42 = arith.cmpi slt, %31, %41 : vector<5x32xi32>
    %43 = arith.andi %40, %42 : vector<5x32xi1>
    %44 = arith.extui %43 : vector<5x32xi1> to vector<5x32xi32>
    %45 = arith.sitofp %44 : vector<5x32xi32> to vector<5x32xf32>
    %c16_i32_14 = arith.constant 16 : i32
    %46 = vector.broadcast %c16_i32_14 : i32 to vector<5x32xi32>
    %47 = arith.cmpi sge, %31, %46 : vector<5x32xi32>
    %c24_i32 = arith.constant 24 : i32
    %48 = vector.broadcast %c24_i32 : i32 to vector<5x32xi32>
    %49 = arith.cmpi slt, %31, %48 : vector<5x32xi32>
    %50 = arith.andi %47, %49 : vector<5x32xi1>
    %51 = arith.extui %50 : vector<5x32xi1> to vector<5x32xi32>
    %52 = arith.sitofp %51 : vector<5x32xi32> to vector<5x32xf32>
    %c24_i32_15 = arith.constant 24 : i32
    %53 = vector.broadcast %c24_i32_15 : i32 to vector<5x32xi32>
    %54 = arith.cmpi sge, %31, %53 : vector<5x32xi32>
    %c32_i32 = arith.constant 32 : i32
    %55 = vector.broadcast %c32_i32 : i32 to vector<5x32xi32>
    %56 = arith.cmpi slt, %31, %55 : vector<5x32xi32>
    %57 = arith.andi %54, %56 : vector<5x32xi1>
    %58 = arith.extui %57 : vector<5x32xi1> to vector<5x32xi32>
    %59 = arith.sitofp %58 : vector<5x32xi32> to vector<5x32xf32>
    %60 = tpu.concatenate %38, %45, %52, %59 in 0 : vector<5x32xf32>, vector<5x32xf32>, vector<5x32xf32>, vector<5x32xf32> -> vector<20x32xf32>
    %c0_16 = arith.constant 0 : index
    %c0_17 = arith.constant 0 : index
    %c0_18 = arith.constant 0 : index
    %61 = vector.load %arg5[%c0_16, %c0_17, %c0_18] : memref<1x32x96xf32, #tpu.memory_space<vmem>>, vector<1x32x96xf32>
    %62 = vector.shape_cast %61 : vector<1x32x96xf32> to vector<32x96xf32>
    %c0_19 = arith.constant 0 : index
    %c0_20 = arith.constant 0 : index
    %c0_21 = arith.constant 0 : index
    %63 = vector.load %arg6[%c0_19, %c0_20, %c0_21] : memref<1x32x32xf32, #tpu.memory_space<vmem>>, vector<1x32x32xf32>
    %64 = vector.shape_cast %63 : vector<1x32x32xf32> to vector<32x32xf32>
    %c0_22 = arith.constant 0 : index
    %c0_23 = arith.constant 0 : index
    %c0_24 = arith.constant 0 : index
    %65 = vector.load %arg7[%c0_22, %c0_23, %c0_24] : memref<1x32x64xf32, #tpu.memory_space<vmem>>, vector<1x32x64xf32>
    %66 = vector.shape_cast %65 : vector<1x32x64xf32> to vector<32x64xf32>
    %c0_25 = arith.constant 0 : index
    %c0_26 = arith.constant 0 : index
    %c0_27 = arith.constant 0 : index
    %67 = vector.load %arg8[%c0_25, %c0_26, %c0_27] : memref<1x64x32xf32, #tpu.memory_space<vmem>>, vector<1x64x32xf32>
    %68 = vector.shape_cast %67 : vector<1x64x32xf32> to vector<64x32xf32>
    %c0_28 = arith.constant 0 : index
    %c0_29 = arith.constant 0 : index
    %c0_30 = arith.constant 0 : index
    %69 = vector.load %arg9[%c0_28, %c0_29, %c0_30] : memref<1x9x32xf32, #tpu.memory_space<vmem>>, vector<1x9x32xf32>
    %70 = vector.shape_cast %69 : vector<1x9x32xf32> to vector<9x32xf32>
    %c0_31 = arith.constant 0 : index
    %c0_32 = arith.constant 0 : index
    %c0_33 = arith.constant 0 : index
    %71 = vector.load %arg10[%c0_31, %c0_32, %c0_33] : memref<1x1x64xf32, #tpu.memory_space<vmem>>, vector<1x1x64xf32>
    %72 = vector.shape_cast %71 : vector<1x1x64xf32> to vector<1x64xf32>
    %73 = vector.extract_strided_slice %70 {offsets = [0, 0], sizes = [1, 32], strides = [1, 1]} : vector<9x32xf32> to vector<1x32xf32>
    %74 = vector.extract_strided_slice %70 {offsets = [1, 0], sizes = [1, 32], strides = [1, 1]} : vector<9x32xf32> to vector<1x32xf32>
    %75 = vector.extract_strided_slice %70 {offsets = [2, 0], sizes = [1, 32], strides = [1, 1]} : vector<9x32xf32> to vector<1x32xf32>
    %76 = vector.extract_strided_slice %70 {offsets = [3, 0], sizes = [1, 32], strides = [1, 1]} : vector<9x32xf32> to vector<1x32xf32>
    %77 = vector.extract_strided_slice %70 {offsets = [4, 0], sizes = [1, 32], strides = [1, 1]} : vector<9x32xf32> to vector<1x32xf32>
    %78 = vector.extract_strided_slice %70 {offsets = [5, 0], sizes = [1, 32], strides = [1, 1]} : vector<9x32xf32> to vector<1x32xf32>
    %79 = vector.extract_strided_slice %70 {offsets = [6, 0], sizes = [1, 32], strides = [1, 1]} : vector<9x32xf32> to vector<1x32xf32>
    %80 = vector.extract_strided_slice %70 {offsets = [7, 0], sizes = [1, 32], strides = [1, 1]} : vector<9x32xf32> to vector<1x32xf32>
    %81 = vector.extract_strided_slice %70 {offsets = [8, 0], sizes = [1, 32], strides = [1, 1]} : vector<9x32xf32> to vector<1x32xf32>
    %cst_34 = arith.constant dense<0.000000e+00> : vector<5xf32>
    %82 = vector.multi_reduction <add>, %30, %cst_34 [1] : vector<5x32xf32> to vector<5xf32>
    %83 = vector.shape_cast %82 : vector<5xf32> to vector<5x1xf32>
    %cst_35 = arith.constant 3.200000e+01 : f32
    %84 = vector.broadcast %cst_35 : f32 to vector<5x1xf32>
    %85 = arith.divf %83, %84 : vector<5x1xf32>
    %86 = arith.mulf %30, %30 : vector<5x32xf32>
    %cst_36 = arith.constant dense<0.000000e+00> : vector<5xf32>
    %87 = vector.multi_reduction <add>, %86, %cst_36 [1] : vector<5x32xf32> to vector<5xf32>
    %88 = vector.shape_cast %87 : vector<5xf32> to vector<5x1xf32>
    %cst_37 = arith.constant 3.200000e+01 : f32
    %89 = vector.broadcast %cst_37 : f32 to vector<5x1xf32>
    %90 = arith.divf %88, %89 : vector<5x1xf32>
    %91 = arith.mulf %85, %85 : vector<5x1xf32>
    %92 = arith.subf %90, %91 : vector<5x1xf32>
    %93 = vector.broadcast %85 : vector<5x1xf32> to vector<5x32xf32>
    %94 = arith.subf %30, %93 : vector<5x32xf32>
    %cst_38 = arith.constant 9.99999974E-6 : f32
    %95 = vector.broadcast %cst_38 : f32 to vector<5x1xf32>
    %96 = arith.addf %92, %95 : vector<5x1xf32>
    %97 = math.rsqrt %96 : vector<5x1xf32>
    %98 = vector.broadcast %97 : vector<5x1xf32> to vector<5x32xf32>
    %99 = arith.mulf %94, %98 : vector<5x32xf32>
    %100 = vector.broadcast %73 : vector<1x32xf32> to vector<5x32xf32>
    %101 = arith.mulf %99, %100 : vector<5x32xf32>
    %102 = vector.broadcast %74 : vector<1x32xf32> to vector<5x32xf32>
    %103 = arith.addf %101, %102 : vector<5x32xf32>
    %cst_39 = arith.constant dense<0.000000e+00> : vector<5x96xf32>
    %104 = tpu.matmul %103, %62, %cst_39 {dimension_numbers = #tpu.dot_dimension_numbers<[1], [0], [0], [1], [0, 0, 1, 1], [], []>} : vector<5x32xf32>, vector<32x96xf32>, vector<5x96xf32> -> vector<5x96xf32>
    %105 = vector.extract_strided_slice %104 {offsets = [0, 0], sizes = [5, 32], strides = [1, 1]} : vector<5x96xf32> to vector<5x32xf32>
    %106 = vector.broadcast %75 : vector<1x32xf32> to vector<5x32xf32>
    %107 = arith.addf %105, %106 : vector<5x32xf32>
    %cst_40 = arith.constant 0.353553385 : f32
    %108 = vector.broadcast %cst_40 : f32 to vector<5x32xf32>
    %109 = arith.mulf %107, %108 : vector<5x32xf32>
    %110 = vector.extract_strided_slice %104 {offsets = [0, 32], sizes = [5, 32], strides = [1, 1]} : vector<5x96xf32> to vector<5x32xf32>
    %111 = vector.broadcast %76 : vector<1x32xf32> to vector<5x32xf32>
    %112 = arith.addf %110, %111 : vector<5x32xf32>
    %113 = vector.extract_strided_slice %104 {offsets = [0, 64], sizes = [5, 32], strides = [1, 1]} : vector<5x96xf32> to vector<5x32xf32>
    %114 = vector.broadcast %77 : vector<1x32xf32> to vector<5x32xf32>
    %115 = arith.addf %113, %114 : vector<5x32xf32>
    %116 = vector.shape_cast %109 : vector<5x32xf32> to vector<1x5x32xf32>
    %117 = vector.shape_cast %112 : vector<5x32xf32> to vector<1x5x32xf32>
    %118 = vector.shape_cast %115 : vector<5x32xf32> to vector<1x5x32xf32>
    %119 = tpu.concatenate %116, %116, %116, %116 in 1 : vector<1x5x32xf32>, vector<1x5x32xf32>, vector<1x5x32xf32>, vector<1x5x32xf32> -> vector<1x20x32xf32>
    %120 = vector.shape_cast %60 : vector<20x32xf32> to vector<1x20x32xf32>
    %121 = arith.mulf %119, %120 : vector<1x20x32xf32>
    "tpu.trace_start"() <{level = 10 : i32, message = "bqd,bkd->bqk"}> : () -> ()
    %cst_41 = arith.constant dense<0.000000e+00> : vector<1x20x5xf32>
    %122 = tpu.matmul %121, %117, %cst_41 {dimension_numbers = #tpu.dot_dimension_numbers<[2], [2], [1], [1], [0, 0, 0, 1, 1, 1], [0], [0]>} : vector<1x20x32xf32>, vector<1x5x32xf32>, vector<1x20x5xf32> -> vector<1x20x5xf32>
    "tpu.trace_stop"() : () -> ()
    %cst_42 = arith.constant dense<0xFF800000> : vector<1x20xf32>
    %123 = vector.multi_reduction <maximumf>, %122, %cst_42 [2] : vector<1x20x5xf32> to vector<1x20xf32>
    %124 = vector.shape_cast %123 : vector<1x20xf32> to vector<1x20x1xf32>
    %125 = vector.broadcast %124 : vector<1x20x1xf32> to vector<1x20x5xf32>
    %126 = arith.subf %122, %125 : vector<1x20x5xf32>
    %127 = math.exp %126 : vector<1x20x5xf32>
    %cst_43 = arith.constant dense<0.000000e+00> : vector<1x20xf32>
    %128 = vector.multi_reduction <add>, %127, %cst_43 [2] : vector<1x20x5xf32> to vector<1x20xf32>
    %129 = vector.shape_cast %128 : vector<1x20xf32> to vector<1x20x1xf32>
    %130 = vector.broadcast %129 : vector<1x20x1xf32> to vector<1x20x5xf32>
    %131 = arith.divf %127, %130 : vector<1x20x5xf32>
    "tpu.trace_start"() <{level = 10 : i32, message = "bqk,bkd->bqd"}> : () -> ()
    %cst_44 = arith.constant dense<0.000000e+00> : vector<1x20x32xf32>
    %132 = tpu.matmul %131, %118, %cst_44 {dimension_numbers = #tpu.dot_dimension_numbers<[2], [1], [1], [2], [0, 0, 0, 1, 1, 2], [0], [0]>} : vector<1x20x5xf32>, vector<1x5x32xf32>, vector<1x20x32xf32> -> vector<1x20x32xf32>
    "tpu.trace_stop"() : () -> ()
    %133 = vector.shape_cast %60 : vector<20x32xf32> to vector<1x20x32xf32>
    %134 = arith.mulf %132, %133 : vector<1x20x32xf32>
    %135 = vector.extract_strided_slice %134 {offsets = [0, 0, 0], sizes = [1, 5, 32], strides = [1, 1, 1]} : vector<1x20x32xf32> to vector<1x5x32xf32>
    %136 = vector.extract_strided_slice %134 {offsets = [0, 5, 0], sizes = [1, 5, 32], strides = [1, 1, 1]} : vector<1x20x32xf32> to vector<1x5x32xf32>
    %137 = arith.addf %135, %136 : vector<1x5x32xf32>
    %138 = vector.extract_strided_slice %134 {offsets = [0, 10, 0], sizes = [1, 5, 32], strides = [1, 1, 1]} : vector<1x20x32xf32> to vector<1x5x32xf32>
    %139 = arith.addf %137, %138 : vector<1x5x32xf32>
    %140 = vector.extract_strided_slice %134 {offsets = [0, 15, 0], sizes = [1, 5, 32], strides = [1, 1, 1]} : vector<1x20x32xf32> to vector<1x5x32xf32>
    %141 = arith.addf %139, %140 : vector<1x5x32xf32>
    %142 = vector.shape_cast %141 : vector<1x5x32xf32> to vector<5x32xf32>
    %cst_45 = arith.constant dense<0.000000e+00> : vector<5x32xf32>
    %143 = tpu.matmul %142, %64, %cst_45 {dimension_numbers = #tpu.dot_dimension_numbers<[1], [0], [0], [1], [0, 0, 1, 1], [], []>} : vector<5x32xf32>, vector<32x32xf32>, vector<5x32xf32> -> vector<5x32xf32>
    %144 = vector.broadcast %78 : vector<1x32xf32> to vector<5x32xf32>
    %145 = arith.addf %143, %144 : vector<5x32xf32>
    %146 = arith.addf %30, %145 : vector<5x32xf32>
    %cst_46 = arith.constant dense<0.000000e+00> : vector<5xf32>
    %147 = vector.multi_reduction <add>, %146, %cst_46 [1] : vector<5x32xf32> to vector<5xf32>
    %148 = vector.shape_cast %147 : vector<5xf32> to vector<5x1xf32>
    %cst_47 = arith.constant 3.200000e+01 : f32
    %149 = vector.broadcast %cst_47 : f32 to vector<5x1xf32>
    %150 = arith.divf %148, %149 : vector<5x1xf32>
    %151 = arith.mulf %146, %146 : vector<5x32xf32>
    %cst_48 = arith.constant dense<0.000000e+00> : vector<5xf32>
    %152 = vector.multi_reduction <add>, %151, %cst_48 [1] : vector<5x32xf32> to vector<5xf32>
    %153 = vector.shape_cast %152 : vector<5xf32> to vector<5x1xf32>
    %cst_49 = arith.constant 3.200000e+01 : f32
    %154 = vector.broadcast %cst_49 : f32 to vector<5x1xf32>
    %155 = arith.divf %153, %154 : vector<5x1xf32>
    %156 = arith.mulf %150, %150 : vector<5x1xf32>
    %157 = arith.subf %155, %156 : vector<5x1xf32>
    %158 = vector.broadcast %150 : vector<5x1xf32> to vector<5x32xf32>
    %159 = arith.subf %146, %158 : vector<5x32xf32>
    %cst_50 = arith.constant 9.99999974E-6 : f32
    %160 = vector.broadcast %cst_50 : f32 to vector<5x1xf32>
    %161 = arith.addf %157, %160 : vector<5x1xf32>
    %162 = math.rsqrt %161 : vector<5x1xf32>
    %163 = vector.broadcast %162 : vector<5x1xf32> to vector<5x32xf32>
    %164 = arith.mulf %159, %163 : vector<5x32xf32>
    %165 = vector.broadcast %79 : vector<1x32xf32> to vector<5x32xf32>
    %166 = arith.mulf %164, %165 : vector<5x32xf32>
    %167 = vector.broadcast %80 : vector<1x32xf32> to vector<5x32xf32>
    %168 = arith.addf %166, %167 : vector<5x32xf32>
    %cst_51 = arith.constant dense<0.000000e+00> : vector<5x64xf32>
    %169 = tpu.matmul %168, %66, %cst_51 {dimension_numbers = #tpu.dot_dimension_numbers<[1], [0], [0], [1], [0, 0, 1, 1], [], []>} : vector<5x32xf32>, vector<32x64xf32>, vector<5x64xf32> -> vector<5x64xf32>
    %170 = vector.broadcast %72 : vector<1x64xf32> to vector<5x64xf32>
    %171 = arith.addf %169, %170 : vector<5x64xf32>
    %cst_52 = arith.constant 1.702000e+00 : f32
    %172 = vector.broadcast %cst_52 : f32 to vector<5x64xf32>
    %173 = arith.mulf %172, %171 : vector<5x64xf32>
    %174 = arith.negf %173 : vector<5x64xf32>
    %175 = math.exp %174 : vector<5x64xf32>
    %cst_53 = arith.constant 1.000000e+00 : f32
    %176 = vector.broadcast %cst_53 : f32 to vector<5x64xf32>
    %177 = arith.addf %176, %175 : vector<5x64xf32>
    %178 = arith.divf %176, %177 : vector<5x64xf32>
    %179 = arith.mulf %171, %178 : vector<5x64xf32>
    %cst_54 = arith.constant dense<0.000000e+00> : vector<5x32xf32>
    %180 = tpu.matmul %179, %68, %cst_54 {dimension_numbers = #tpu.dot_dimension_numbers<[1], [0], [0], [1], [0, 0, 1, 1], [], []>} : vector<5x64xf32>, vector<64x32xf32>, vector<5x32xf32> -> vector<5x32xf32>
    %181 = vector.broadcast %81 : vector<1x32xf32> to vector<5x32xf32>
    %182 = arith.addf %180, %181 : vector<5x32xf32>
    %183 = arith.addf %146, %182 : vector<5x32xf32>
    %184 = vector.shape_cast %183 : vector<5x32xf32> to vector<1x5x32xf32>
    %185 = vector.extract_strided_slice %184 {offsets = [0, 1, 0], sizes = [1, 4, 32], strides = [1, 1, 1]} : vector<1x5x32xf32> to vector<1x4x32xf32>
    %c0_55 = arith.constant 0 : index
    %c0_56 = arith.constant 0 : index
    %c0_57 = arith.constant 0 : index
    %186 = vector.load %arg11[%c0_55, %c0_56, %c0_57] : memref<1x4x32xf32, #tpu.memory_space<vmem>>, vector<1x4x32xf32>
    tpu.vector_store %arg11[%c0_55, %c0_56, %c0_57], %185 {strides = array<i32>} : memref<1x4x32xf32, #tpu.memory_space<vmem>>, vector<1x4x32xf32>,
    return
  }
  func.func @transform_0(%arg0: i32) -> (i32, i32, i32) {
    %c0_i32 = arith.constant 0 : i32
    %c0_i32_0 = arith.constant 0 : i32
    %c0_i32_1 = arith.constant 0 : i32
    return %arg0, %c0_i32, %c0_i32_0 : i32, i32, i32
  }
  func.func @transform_1(%arg0: i32) -> (i32, i32) {
    %c0_i32 = arith.constant 0 : i32
    %c0_i32_0 = arith.constant 0 : i32
    %c0_i32_1 = arith.constant 0 : i32
    return %c0_i32, %c0_i32_0 : i32, i32
  }
  func.func @transform_2(%arg0: i32) -> (i32, i32) {
    %c0_i32 = arith.constant 0 : i32
    %c0_i32_0 = arith.constant 0 : i32
    %c0_i32_1 = arith.constant 0 : i32
    return %c0_i32, %c0_i32_0 : i32, i32
  }
  func.func @transform_3(%arg0: i32) -> (i32, i32) {
    %c0_i32 = arith.constant 0 : i32
    %c0_i32_0 = arith.constant 0 : i32
    %c0_i32_1 = arith.constant 0 : i32
    return %c0_i32, %c0_i32_0 : i32, i32
  }
  func.func @transform_4(%arg0: i32) -> (i32, i32, i32) {
    %c0_i32 = arith.constant 0 : i32
    %c0_i32_0 = arith.constant 0 : i32
    %c0_i32_1 = arith.constant 0 : i32
    %c0_i32_2 = arith.constant 0 : i32
    return %c0_i32, %c0_i32_0, %c0_i32_1 : i32, i32, i32
  }
  func.func @transform_5(%arg0: i32) -> (i32, i32, i32) {
    %c0_i32 = arith.constant 0 : i32
    %c0_i32_0 = arith.constant 0 : i32
    %c0_i32_1 = arith.constant 0 : i32
    %c0_i32_2 = arith.constant 0 : i32
    return %c0_i32, %c0_i32_0, %c0_i32_1 : i32, i32, i32
  }
  func.func @transform_6(%arg0: i32) -> (i32, i32, i32) {
    %c0_i32 = arith.constant 0 : i32
    %c0_i32_0 = arith.constant 0 : i32
    %c0_i32_1 = arith.constant 0 : i32
    %c0_i32_2 = arith.constant 0 : i32
    return %c0_i32, %c0_i32_0, %c0_i32_1 : i32, i32, i32
  }
  func.func @transform_7(%arg0: i32) -> (i32, i32, i32) {
    %c0_i32 = arith.constant 0 : i32
    %c0_i32_0 = arith.constant 0 : i32
    %c0_i32_1 = arith.constant 0 : i32
    %c0_i32_2 = arith.constant 0 : i32
    return %c0_i32, %c0_i32_0, %c0_i32_1 : i32, i32, i32
  }
  func.func @transform_8(%arg0: i32) -> (i32, i32, i32) {
    %c0_i32 = arith.constant 0 : i32
    %c0_i32_0 = arith.constant 0 : i32
    %c0_i32_1 = arith.constant 0 : i32
    %c0_i32_2 = arith.constant 0 : i32
    return %c0_i32, %c0_i32_0, %c0_i32_1 : i32, i32, i32
  }
  func.func @transform_9(%arg0: i32) -> (i32, i32, i32) {
    %c0_i32 = arith.constant 0 : i32
    %c0_i32_0 = arith.constant 0 : i32
    %c0_i32_1 = arith.constant 0 : i32
    %c0_i32_2 = arith.constant 0 : i32
    return %c0_i32, %c0_i32_0, %c0_i32_1 : i32, i32, i32
  }
  func.func @transform_10(%arg0: i32) -> (i32, i32, i32) {
    %c0_i32 = arith.constant 0 : i32
    %c0_i32_0 = arith.constant 0 : i32
    %c0_i32_1 = arith.constant 0 : i32
    return %arg0, %c0_i32, %c0_i32_0 : i32, i32, i32
  }
}

</mosaic_0001>

<llo_original>
// kernel: tpu_custom_call.1
$region0: #{tpu_custom_call.1}
  #allocation0 [shape = 'u32[]', space=smem, size = 0x4, offset = 0x4, fixed_abs, tag = 'smem constant byte address 0x4 - core index']
  #allocation1 [shape = 'u32[72,128]{1,0:T(1,128)}', space=vmem, size = 0x9000, scoped, tag = 'internal scratch']
  %s0 = inlined_call_operand.vmem [shape: f32[2,5,192], index: 0, kind: input, shape index: {}]
  %s1 = inlined_call_operand.vmem [shape: f32[192,32], index: 1, kind: input, shape index: {}]
  %s2 = inlined_call_operand.vmem [shape: f32[5,32], index: 2, kind: input, shape index: {}]
  %s3 = inlined_call_operand.vmem [shape: f32[2,32], index: 3, kind: input, shape index: {}]
  %s4 = inlined_call_operand.vmem [shape: f32[1,32,96], index: 4, kind: input, shape index: {}]
  %s5 = inlined_call_operand.vmem [shape: f32[1,32,32], index: 5, kind: input, shape index: {}]
  %s6 = inlined_call_operand.vmem [shape: f32[1,32,64], index: 6, kind: input, shape index: {}]
  %s7 = inlined_call_operand.vmem [shape: f32[1,64,32], index: 7, kind: input, shape index: {}]
  %s8 = inlined_call_operand.vmem [shape: f32[1,9,32], index: 8, kind: input, shape index: {}]
  %s9 = inlined_call_operand.vmem [shape: f32[1,1,64], index: 9, kind: input, shape index: {}]
  %s10 = inlined_call_operand.hbm [shape: f32[2,4,32], index: 10, kind: output, shape index: {}]
  %s11 = sld [smem:[#allocation0]]
  $region73: #{tpu_custom_call.1} parent=0
    _
  %s13 = ssub.s32 1, %s11
  %s14 = scalar_select 0, %s13, %s11
  $region1: #{tpu_custom_call.1} parent=0
    #allocation2 [shape = 'u8[4096]{0}', space=vmem, size = 0x1000, scoped, tag = 'output window, operand 0']
    #allocation3 [shape = 's32[2]{0}', space=sflag, size = 0x8, scoped, tag = 'scoped memory for tpu_custom_call.1']
    %15 = vsyncpa [#allocation3], 0
    %s16 = scalar_lea.sflag [#allocation3], 1
    %17 = vsyncpa %s16, 0
    loop: start=0, step=1, limit=4
    $region2: #{tpu_custom_call.1} parent=1 // loop_pre_header
      _
    $region3: #{tpu_custom_call.1} parent=1 // loop_header
      %s19 = sphi 0, %s23
      %p20 = scmp.ge.s32.totalorder %s19, 4
      %s29 = sphi 0, %s31
      %s32 = sphi 0, %s29
      %s33 = sphi 0, %s32
      %s49 = sphi 0, %s33
      %s53 = sphi 0, %s53
      %s55 = sphi 0, %s53
      %s56 = sphi 0, %s55
      %s70 = sphi 0, %s56
      %s74 = sphi 0, %s74
      %s76 = sphi 0, %s74
      %s77 = sphi 0, %s76
      %s91 = sphi 0, %s77
      %s95 = sphi 0, %s95
      %s97 = sphi 0, %s95
      %s98 = sphi 0, %s97
      %s112 = sphi 0, %s98
      %s116 = sphi 0, %s116
      %s118 = sphi 0, %s116
      %s119 = sphi 0, %s118
      %s133 = sphi 0, %s119
      %s137 = sphi 0, %s137
      %s139 = sphi 0, %s137
      %s140 = sphi 0, %s139
      %s154 = sphi 0, %s140
      %s158 = sphi 0, %s158
      %s160 = sphi 0, %s158
      %s161 = sphi 0, %s160
      %s175 = sphi 0, %s161
      %s179 = sphi 0, %s179
      %s181 = sphi 0, %s179
      %s182 = sphi 0, %s181
      %s196 = sphi 0, %s182
      %s200 = sphi 0, %s200
      %s202 = sphi 0, %s200
      %s203 = sphi 0, %s202
      %s217 = sphi 0, %s203
      %s221 = sphi 0, %s221
      %s223 = sphi 0, %s221
      %s224 = sphi 0, %s223
      %s238 = sphi 0, %s224
      %s244 = sphi 0, %s246
      %s247 = sphi 0, %s244
      %s248 = sphi 0, %s247
      %s264 = sphi 0, %s248
    $region4: #{tpu_custom_call.1} parent=1 // loop_header_branch
      %22 = sbr.rel (%p20) target = $region8
    $region5: #{tpu_custom_call.1} parent=1 // loop_body
      %s24 = ssub.s32 %s19, 1
      %s25 = ssub.s32 %s19, 2
      %s26 = sadd.s32 %s19, 1
      %s27 = ssub.s32 %s19, %s26
      %p28 = scmp.eq.s32.totalorder %s27, 0
      %s30 = sadd.s32 %s29, 1
      %s31 = scalar_select %p28, %s29, %s30
      %p34 = pneg %p28
      %p35 = scmp.eq.s32.totalorder %s19, 1
      %p36 = por %p34, %p35
      %p37 = scmp.ne.s32.totalorder %s29, %s32
      %p38 = scmp.eq.s32.totalorder %s19, 0
      %p39 = por %p37, %p38
      %p40 = scmp.ne.s32.totalorder %s29, %s32
      %p41 = scmp.eq.s32.totalorder %s24, 1
      %p42 = por %p40, %p41
      %p43 = scmp.ne.s32.totalorder %s32, %s33
      %p44 = scmp.eq.s32.totalorder %s24, 0
      %p45 = por %p43, %p44
      %p46 = scmp.ne.s32.totalorder %s32, %s33
      %p47 = scmp.eq.s32.totalorder %s25, 1
      %p48 = por %p46, %p47
      %p50 = scmp.ne.s32.totalorder %s33, %s49
      %p51 = scmp.eq.s32.totalorder %s25, 0
      %p52 = por %p50, %p51
      %s54 = sadd.s32 %s53, 1
      %p57 = scmp.eq.s32.totalorder %s19, 1
      %p58 = scmp.ne.s32.totalorder %s53, %s55
      %p59 = scmp.eq.s32.totalorder %s19, 0
      %p60 = por %p58, %p59
      %p61 = scmp.ne.s32.totalorder %s53, %s55
      %p62 = scmp.eq.s32.totalorder %s24, 1
      %p63 = por %p61, %p62
      %p64 = scmp.ne.s32.totalorder %s55, %s56
      %p65 = scmp.eq.s32.totalorder %s24, 0
      %p66 = por %p64, %p65
      %p67 = scmp.ne.s32.totalorder %s55, %s56
      %p68 = scmp.eq.s32.totalorder %s25, 1
      %p69 = por %p67, %p68
      %p71 = scmp.ne.s32.totalorder %s56, %s70
      %p72 = scmp.eq.s32.totalorder %s25, 0
      %p73 = por %p71, %p72
      %s75 = sadd.s32 %s74, 1
      %p78 = scmp.eq.s32.totalorder %s19, 1
      %p79 = scmp.ne.s32.totalorder %s74, %s76
      %p80 = scmp.eq.s32.totalorder %s19, 0
      %p81 = por %p79, %p80
      %p82 = scmp.ne.s32.totalorder %s74, %s76
      %p83 = scmp.eq.s32.totalorder %s24, 1
      %p84 = por %p82, %p83
      %p85 = scmp.ne.s32.totalorder %s76, %s77
      %p86 = scmp.eq.s32.totalorder %s24, 0
      %p87 = por %p85, %p86
      %p88 = scmp.ne.s32.totalorder %s76, %s77
      %p89 = scmp.eq.s32.totalorder %s25, 1
      %p90 = por %p88, %p89
      %p92 = scmp.ne.s32.totalorder %s77, %s91
      %p93 = scmp.eq.s32.totalorder %s25, 0
      %p94 = por %p92, %p93
      %s96 = sadd.s32 %s95, 1
      %p99 = scmp.eq.s32.totalorder %s19, 1
      %p100 = scmp.ne.s32.totalorder %s95, %s97
      %p101 = scmp.eq.s32.totalorder %s19, 0
      %p102 = por %p100, %p101
      %p103 = scmp.ne.s32.totalorder %s95, %s97
      %p104 = scmp.eq.s32.totalorder %s24, 1
      %p105 = por %p103, %p104
      %p106 = scmp.ne.s32.totalorder %s97, %s98
      %p107 = scmp.eq.s32.totalorder %s24, 0
      %p108 = por %p106, %p107
      %p109 = scmp.ne.s32.totalorder %s97, %s98
      %p110 = scmp.eq.s32.totalorder %s25, 1
      %p111 = por %p109, %p110
      %p113 = scmp.ne.s32.totalorder %s98, %s112
      %p114 = scmp.eq.s32.totalorder %s25, 0
      %p115 = por %p113, %p114
      %s117 = sadd.s32 %s116, 1
      %p120 = scmp.eq.s32.totalorder %s19, 1
      %p121 = scmp.ne.s32.totalorder %s116, %s118
      %p122 = scmp.eq.s32.totalorder %s19, 0
      %p123 = por %p121, %p122
      %p124 = scmp.ne.s32.totalorder %s116, %s118
      %p125 = scmp.eq.s32.totalorder %s24, 1
      %p126 = por %p124, %p125
      %p127 = scmp.ne.s32.totalorder %s118, %s119
      %p128 = scmp.eq.s32.totalorder %s24, 0
      %p129 = por %p127, %p128
      %p130 = scmp.ne.s32.totalorder %s118, %s119
      %p131 = scmp.eq.s32.totalorder %s25, 1
      %p132 = por %p130, %p131
      %p134 = scmp.ne.s32.totalorder %s119, %s133
      %p135 = scmp.eq.s32.totalorder %s25, 0
      %p136 = por %p134, %p135
      %s138 = sadd.s32 %s137, 1
      %p141 = scmp.eq.s32.totalorder %s19, 1
      %p142 = scmp.ne.s32.totalorder %s137, %s139
      %p143 = scmp.eq.s32.totalorder %s19, 0
      %p144 = por %p142, %p143
      %p145 = scmp.ne.s32.totalorder %s137, %s139
      %p146 = scmp.eq.s32.totalorder %s24, 1
      %p147 = por %p145, %p146
      %p148 = scmp.ne.s32.totalorder %s139, %s140
      %p149 = scmp.eq.s32.totalorder %s24, 0
      %p150 = por %p148, %p149
      %p151 = scmp.ne.s32.totalorder %s139, %s140
      %p152 = scmp.eq.s32.totalorder %s25, 1
      %p153 = por %p151, %p152
      %p155 = scmp.ne.s32.totalorder %s140, %s154
      %p156 = scmp.eq.s32.totalorder %s25, 0
      %p157 = por %p155, %p156
      %s159 = sadd.s32 %s158, 1
      %p162 = scmp.eq.s32.totalorder %s19, 1
      %p163 = scmp.ne.s32.totalorder %s158, %s160
      %p164 = scmp.eq.s32.totalorder %s19, 0
      %p165 = por %p163, %p164
      %p166 = scmp.ne.s32.totalorder %s158, %s160
      %p167 = scmp.eq.s32.totalorder %s24, 1
      %p168 = por %p166, %p167
      %p169 = scmp.ne.s32.totalorder %s160, %s161
      %p170 = scmp.eq.s32.totalorder %s24, 0
      %p171 = por %p169, %p170
      %p172 = scmp.ne.s32.totalorder %s160, %s161
      %p173 = scmp.eq.s32.totalorder %s25, 1
      %p174 = por %p172, %p173
      %p176 = scmp.ne.s32.totalorder %s161, %s175
      %p177 = scmp.eq.s32.totalorder %s25, 0
      %p178 = por %p176, %p177
      %s180 = sadd.s32 %s179, 1
      %p183 = scmp.eq.s32.totalorder %s19, 1
      %p184 = scmp.ne.s32.totalorder %s179, %s181
      %p185 = scmp.eq.s32.totalorder %s19, 0
      %p186 = por %p184, %p185
      %p187 = scmp.ne.s32.totalorder %s179, %s181
      %p188 = scmp.eq.s32.totalorder %s24, 1
      %p189 = por %p187, %p188
      %p190 = scmp.ne.s32.totalorder %s181, %s182
      %p191 = scmp.eq.s32.totalorder %s24, 0
      %p192 = por %p190, %p191
      %p193 = scmp.ne.s32.totalorder %s181, %s182
      %p194 = scmp.eq.s32.totalorder %s25, 1
      %p195 = por %p193, %p194
      %p197 = scmp.ne.s32.totalorder %s182, %s196
      %p198 = scmp.eq.s32.totalorder %s25, 0
      %p199 = por %p197, %p198
      %s201 = sadd.s32 %s200, 1
      %p204 = scmp.eq.s32.totalorder %s19, 1
      %p205 = scmp.ne.s32.totalorder %s200, %s202
      %p206 = scmp.eq.s32.totalorder %s19, 0
      %p207 = por %p205, %p206
      %p208 = scmp.ne.s32.totalorder %s200, %s202
      %p209 = scmp.eq.s32.totalorder %s24, 1
      %p210 = por %p208, %p209
      %p211 = scmp.ne.s32.totalorder %s202, %s203
      %p212 = scmp.eq.s32.totalorder %s24, 0
      %p213 = por %p211, %p212
      %p214 = scmp.ne.s32.totalorder %s202, %s203
      %p215 = scmp.eq.s32.totalorder %s25, 1
      %p216 = por %p214, %p215
      %p218 = scmp.ne.s32.totalorder %s203, %s217
      %p219 = scmp.eq.s32.totalorder %s25, 0
      %p220 = por %p218, %p219
      %s222 = sadd.s32 %s221, 1
      %p225 = scmp.eq.s32.totalorder %s19, 1
      %p226 = scmp.ne.s32.totalorder %s221, %s223
      %p227 = scmp.eq.s32.totalorder %s19, 0
      %p228 = por %p226, %p227
      %p229 = scmp.ne.s32.totalorder %s221, %s223
      %p230 = scmp.eq.s32.totalorder %s24, 1
      %p231 = por %p229, %p230
      %p232 = scmp.ne.s32.totalorder %s223, %s224
      %p233 = scmp.eq.s32.totalorder %s24, 0
      %p234 = por %p232, %p233
      %p235 = scmp.ne.s32.totalorder %s223, %s224
      %p236 = scmp.eq.s32.totalorder %s25, 1
      %p237 = por %p235, %p236
      %p239 = scmp.ne.s32.totalorder %s224, %s238
      %p240 = scmp.eq.s32.totalorder %s25, 0
      %p241 = por %p239, %p240
      %s242 = ssub.s32 %s19, %s26
      %p243 = scmp.eq.s32.totalorder %s242, 0
      %s245 = sadd.s32 %s244, 1
      %s246 = scalar_select %p243, %s244, %s245
      %p249 = pneg %p243
      %p250 = scmp.eq.s32.totalorder %s19, 1
      %p251 = por %p249, %p250
      %p252 = scmp.ne.s32.totalorder %s244, %s247
      %p253 = scmp.eq.s32.totalorder %s19, 0
      %p254 = por %p252, %p253
      %p255 = scmp.ne.s32.totalorder %s244, %s247
      %p256 = scmp.eq.s32.totalorder %s24, 1
      %p257 = por %p255, %p256
      %p258 = scmp.ne.s32.totalorder %s247, %s248
      %p259 = scmp.eq.s32.totalorder %s24, 0
      %p260 = por %p258, %p259
      %p261 = scmp.ne.s32.totalorder %s247, %s248
      %p262 = scmp.eq.s32.totalorder %s25, 1
      %p263 = por %p261, %p262
      %p265 = scmp.ne.s32.totalorder %s248, %s264
      %p266 = scmp.eq.s32.totalorder %s25, 0
      %p267 = por %p265, %p266
      %p268 = scmp.le.s32.totalorder 1, %s19
      %p269 = scmp.lt.s32.totalorder %s19, 3
      %p270 = pnand %p268, %p269
      %p271 = pneg %p270
      // Predicated region
      $region9: #{tpu_custom_call.1} parent=5 // pred_check
        _
      $region10: #{tpu_custom_call.1} parent=5 // pred_check_branch
        %273 = sbr.rel (%p270) target = $region12
      $region11: #{tpu_custom_call.1} parent=5 // pred_region
        %s274 = ssub.s32 %s19, 1
        // Predicated region
        $region13: #{tpu_custom_call.1} parent=11 // pred_check
          %p275 = pneg %p66
        $region14: #{tpu_custom_call.1} parent=11 // pred_check_branch
          %277 = sbr.rel (%p275) target = $region16
        $region15: #{tpu_custom_call.1} parent=11 // pred_region
          _
        $region16: #{tpu_custom_call.1} parent=11 // pred_fallthru
          _
        // Predicated region
        $region17: #{tpu_custom_call.1} parent=11 // pred_check
          %p278 = pneg %p87
        $region18: #{tpu_custom_call.1} parent=11 // pred_check_branch
          %280 = sbr.rel (%p278) target = $region20
        $region19: #{tpu_custom_call.1} parent=11 // pred_region
          _
        $region20: #{tpu_custom_call.1} parent=11 // pred_fallthru
          _
        // Predicated region
        $region21: #{tpu_custom_call.1} parent=11 // pred_check
          %p281 = pneg %p108
        $region22: #{tpu_custom_call.1} parent=11 // pred_check_branch
          %283 = sbr.rel (%p281) target = $region24
        $region23: #{tpu_custom_call.1} parent=11 // pred_region
          _
        $region24: #{tpu_custom_call.1} parent=11 // pred_fallthru
          _
        // Predicated region
        $region25: #{tpu_custom_call.1} parent=11 // pred_check
          %p284 = pneg %p129
        $region26: #{tpu_custom_call.1} parent=11 // pred_check_branch
          %286 = sbr.rel (%p284) target = $region28
        $region27: #{tpu_custom_call.1} parent=11 // pred_region
          _
        $region28: #{tpu_custom_call.1} parent=11 // pred_fallthru
          _
        // Predicated region
        $region29: #{tpu_custom_call.1} parent=11 // pred_check
          %p287 = pneg %p150
        $region30: #{tpu_custom_call.1} parent=11 // pred_check_branch
          %289 = sbr.rel (%p287) target = $region32
        $region31: #{tpu_custom_call.1} parent=11 // pred_region
          _
        $region32: #{tpu_custom_call.1} parent=11 // pred_fallthru
          _
        // Predicated region
        $region33: #{tpu_custom_call.1} parent=11 // pred_check
          %p290 = pneg %p171
        $region34: #{tpu_custom_call.1} parent=11 // pred_check_branch
          %292 = sbr.rel (%p290) target = $region36
        $region35: #{tpu_custom_call.1} parent=11 // pred_region
          _
        $region36: #{tpu_custom_call.1} parent=11 // pred_fallthru
          _
        // Predicated region
        $region37: #{tpu_custom_call.1} parent=11 // pred_check
          %p293 = pneg %p192
        $region38: #{tpu_custom_call.1} parent=11 // pred_check_branch
          %295 = sbr.rel (%p293) target = $region40
        $region39: #{tpu_custom_call.1} parent=11 // pred_region
          _
        $region40: #{tpu_custom_call.1} parent=11 // pred_fallthru
          _
        // Predicated region
        $region41: #{tpu_custom_call.1} parent=11 // pred_check
          %p296 = pneg %p213
        $region42: #{tpu_custom_call.1} parent=11 // pred_check_branch
          %298 = sbr.rel (%p296) target = $region44
        $region43: #{tpu_custom_call.1} parent=11 // pred_region
          _
        $region44: #{tpu_custom_call.1} parent=11 // pred_fallthru
          _
        // Predicated region
        $region45: #{tpu_custom_call.1} parent=11 // pred_check
          %p299 = pneg %p234
        $region46: #{tpu_custom_call.1} parent=11 // pred_check_branch
          %301 = sbr.rel (%p299) target = $region48
        $region47: #{tpu_custom_call.1} parent=11 // pred_region
          _
        $region48: #{tpu_custom_call.1} parent=11 // pred_fallthru
          _
      $region12: #{tpu_custom_call.1} parent=5 // pred_fallthru
        _
      %p302 = scmp.lt.s32.totalorder %s19, 2
      // Predicated region
      $region49: #{tpu_custom_call.1} parent=5 // pred_check
        %p303 = pneg %p302
      $region50: #{tpu_custom_call.1} parent=5 // pred_check_branch
        %305 = sbr.rel (%p303) target = $region52
      $region51: #{tpu_custom_call.1} parent=5 // pred_region
        // Predicated region
        $region53: #{tpu_custom_call.1} parent=51 // pred_check
          %p306 = pneg %p39
        $region54: #{tpu_custom_call.1} parent=51 // pred_check_branch
          %308 = sbr.rel (%p306) target = $region56
        $region55: #{tpu_custom_call.1} parent=51 // pred_region
          %p309 = scmp.lt.s32.totalorder %s19, 1
          %s310 = scalar_select %p309, %s19, 1
          %s311 = smul.addr %s310, 2
          %s312 = smul.addr %s311, 8
          %s313 = scalar_lea.vmem %s0, %s312
        $region56: #{tpu_custom_call.1} parent=51 // pred_fallthru
          _
      $region52: #{tpu_custom_call.1} parent=5 // pred_fallthru
        _
      %p314 = scmp.le.s32.totalorder 1, %s19
      %p315 = scmp.lt.s32.totalorder %s19, 3
      %p316 = pnand %p314, %p315
      %p317 = pneg %p316
      // Predicated region
      $region57: #{tpu_custom_call.1} parent=5 // pred_check
        _
      $region58: #{tpu_custom_call.1} parent=5 // pred_check_branch
        %319 = sbr.rel (%p316) target = $region60
      $region59: #{tpu_custom_call.1} parent=5 // pred_region
        %s320 = ssub.s32 %s19, 1
        %p321 = scmp.lt.s32.totalorder %s24, 1
        %s322 = scalar_select %p321, %s24, 1
        %s323 = smul.addr %s322, 2
        %s324 = smul.addr %s323, 8
        %s325 = scalar_lea.vmem %s0, %s324
        %p326 = pneg %p45
        %p327 = pneg %p42
        %p328 = pneg %p66
        %p329 = pneg %p63
        %p330 = pneg %p87
        %p331 = pneg %p84
        %p332 = pneg %p108
        %p333 = pneg %p105
        %p334 = pneg %p129
        %p335 = pneg %p126
        %p336 = pneg %p150
        %p337 = pneg %p147
        %p338 = pneg %p171
        %p339 = pneg %p168
        %p340 = pneg %p192
        %p341 = pneg %p189
        %p342 = pneg %p213
        %p343 = pneg %p210
        %p344 = pneg %p234
        %p345 = pneg %p231
        %p346 = pneg %p260
        %p347 = pneg %p257
        %s348 = sand.u32 %s247, 1
        %s349 = scalar_lea.sflag [#allocation3], %s348
        %s350 = sand.u32 %s247, 1
        %s351 = smul.addr %s350, 4
        %s352 = scalar_lea.vmem [#allocation2], %s351
        %p353 = scmp.lt.s32.totalorder %s24, 1
        %s354 = scalar_select %p353, %s24, 1
        %s355 = smul.addr %s354, 2
        %s356 = smul.addr %s355, 8
        %s357 = scalar_lea.vmem %s0, %s356
        %v358 = vld [vmem:[%s357] sm:$0x1f]
        %v359 = vld [vmem:[%s357 + $0x8] sm:$0x1f]
        %v360 = vld [vmem:[%s1] sm:$0xff]
        %v361 = vld [vmem:[%s1 + $0x8] sm:$0xff]
        %v362 = vld [vmem:[%s1 + $0x10] sm:$0xff]
        %v363 = vld [vmem:[%s1 + $0x18] sm:$0xff]
        %v364 = vld [vmem:[%s1 + $0x20] sm:$0xff]
        %v365 = vld [vmem:[%s1 + $0x28] sm:$0xff]
        %v366 = vld [vmem:[%s1 + $0x30] sm:$0xff]
        %v367 = vld [vmem:[%s1 + $0x38] sm:$0xff]
        %v368 = vld [vmem:[%s1 + $0x40] sm:$0xff]
        %v369 = vld [vmem:[%s1 + $0x48] sm:$0xff]
        %v370 = vld [vmem:[%s1 + $0x50] sm:$0xff]
        %v371 = vld [vmem:[%s1 + $0x58] sm:$0xff]
        %v372 = vld [vmem:[%s1 + $0x60] sm:$0xff]
        %v373 = vld [vmem:[%s1 + $0x68] sm:$0xff]
        %v374 = vld [vmem:[%s1 + $0x70] sm:$0xff]
        %v375 = vld [vmem:[%s1 + $0x78] sm:$0xff]
        %v376 = vld [vmem:[%s1 + $0x80] sm:$0xff]
        %v377 = vld [vmem:[%s1 + $0x88] sm:$0xff]
        %v378 = vld [vmem:[%s1 + $0x90] sm:$0xff]
        %v379 = vld [vmem:[%s1 + $0x98] sm:$0xff]
        %v380 = vld [vmem:[%s1 + $0xa0] sm:$0xff]
        %v381 = vld [vmem:[%s1 + $0xa8] sm:$0xff]
        %v382 = vld [vmem:[%s1 + $0xb0] sm:$0xff]
        %v383 = vld [vmem:[%s1 + $0xb8] sm:$0xff]
        %v384 = vld [vmem:[%s2] sm:$0x1f]
        %vm385 = vcmask 523264
        %v387 = vsel %vm385, %v359, 0
        %389 = vmatpush.msra.mxu0 %v375
        %390 = vmatpush.msra.mxu0 %v374
        %391 = vmatpush.msra.mxu0 %v373
        %392 = vmatpush.msra.mxu0 %v372
        %393 = vmatpush.msra.mxu0 %v371
        %394 = vmatpush.msra.mxu0 %v370
        %395 = vmatpush.msra.mxu0 %v369
        %396 = vmatpush.msra.mxu0 %v368
        %397 = vmatpush.msra.mxu0 %v367
        %398 = vmatpush.msra.mxu0 %v366
        %399 = vmatpush.msra.mxu0 %v365
        %400 = vmatpush.msra.mxu0 %v364
        %401 = vmatpush.msra.mxu0 %v363
        %402 = vmatpush.msra.mxu0 %v362
        %403 = vmatpush.msra.mxu0 %v361
        %404 = vmatpush.msra.mxu0 %v360
        %405 = vmatmul.f32.gmra.mxu0 %v358
        %v406 = vpop.f32.mrf.mxu0
        %v407 = vadd.f32 %v384, %v406
        %408 = vdwg.mxu0
        %409 = vmatpush.msra.mxu0 0.0
        %410 = vmatpush.msra.mxu0 0.0
        %411 = vmatpush.msra.mxu0 0.0
        %412 = vmatpush.msra.mxu0 0.0
        %413 = vmatpush.msra.mxu0 0.0
        %414 = vmatpush.msra.mxu0 0.0
        %415 = vmatpush.msra.mxu0 0.0
        %416 = vmatpush.msra.mxu0 0.0
        %417 = vmatpush.msra.mxu0 %v383
        %418 = vmatpush.msra.mxu0 %v382
        %419 = vmatpush.msra.mxu0 %v381
        %420 = vmatpush.msra.mxu0 %v380
        %421 = vmatpush.msra.mxu0 %v379
        %422 = vmatpush.msra.mxu0 %v378
        %423 = vmatpush.msra.mxu0 %v377
        %424 = vmatpush.msra.mxu0 %v376
        %425 = vmatmul.f32.gmra.mxu0 %v387
        %v426 = vpop.f32.mrf.mxu0
        %v427 = vadd.f32 %v407, %v426
        %428 = vdwg.mxu0
        %v429 = vld [vmem:[%s3] sm:$0x3]
        %vm430 = vcmask 258048
        %v431 = vsel %vm430, %v427, 0.0
        %432 = vadd.xlane.f32.xlu0 %v431
        %v433 = vpop.xlane.xlu0 %432
        %v434 = vrcp.pop 32.0
        %v435 = vmul.f32 32.0, %v434
        %v436 = vsub.f32 1.0, %v435
        %v437 = vmul.f32 %v434, %v436
        %v438 = vadd.f32 %v434, %v437
        %vm439 = vweird.f32 %v434
        %v440 = vsel %vm439, %v434, %v438
        %v441 = vmul.f32 %v433, %v440
        %v442 = vmul.f32 %v427, %v427
        %v443 = vsel %vm430, %v442, 0.0
        %444 = vadd.xlane.f32.xlu0 %v443
        %v445 = vpop.xlane.xlu0 %444
        %v446 = vmul.f32 %v445, %v440
        %v447 = vmul.f32 %v441, %v441
        %v448 = vsub.f32 %v446, %v447
        %v449 = vsub.f32 %v427, %v441
        %v450 = vadd.f32 %v448, 1e-05
        %v451 = vrsqrt.pop %v450
        %v452 = vmul.f32 %v451, %v450
        %v453 = vmul.f32 %v452, %v451
        %v454 = vmul.f32 0.5, %v453
        %v455 = vsub.f32 1.5, %v454
        %v456 = vmul.f32 %v451, %v455
        %vm457 = vweird.f32 %v450
        %vm458 = vweird.f32 %v451
        %vm459 = vmor %vm457, %vm458
        %v460 = vsel %vm459, %v451, %v456
        %v461 = vmul.f32 %v449, %v460
        %v462 = vperm.slane %v429, 0
        %v463 = vmul.f32 %v461, %v462
        %v464 = vperm.slane %v429, 1
        %v465 = vadd.f32 %v463, %v464
        %v466 = vlaneseq
        %v467 = vand.u32 %v466, 127
        %vm468 = vcmp.ge.s32.totalorder %v467, 0
        %vm469 = vcmp.lt.s32.totalorder %v467, 8
        %vm470 = vmand %vm468, %vm469
        %v471 = vsel %vm470, 1, 0
        %v472 = vcvt.s32.f32 %v471
        %vm473 = vcmp.ge.s32.totalorder %v467, 8
        %vm474 = vcmp.lt.s32.totalorder %v467, 16
        %vm475 = vmand %vm473, %vm474
        %v476 = vsel %vm475, 1, 0
        %v477 = vcvt.s32.f32 %v476
        %vm478 = vcmp.ge.s32.totalorder %v467, 16
        %vm479 = vcmp.lt.s32.totalorder %v467, 24
        %vm480 = vmand %vm478, %vm479
        %v481 = vsel %vm480, 1, 0
        %v482 = vcvt.s32.f32 %v481
        %vm483 = vcmp.ge.s32.totalorder %v467, 24
        %vm484 = vcmp.lt.s32.totalorder %v467, 32
        %vm485 = vmand %vm483, %vm484
        %v486 = vsel %vm485, 1, 0
        %v487 = vcvt.s32.f32 %v486
        %vm488 = vcmask 1044480
        %v489 = vsel %vm488, %v472, %v477
        %vm490 = vcmask 1041408
        %v491 = vsel %vm490, %v477, %v482
        %vm492 = vcmask 1046528
        %v493 = vsel %vm492, %v491, %v487
        %v494 = vld [vmem:[%s4] sm:$0xff]
        %v495 = vld [vmem:[%s4 + $0x8] sm:$0xff]
        %v496 = vld [vmem:[%s4 + $0x10] sm:$0xff]
        %v497 = vld [vmem:[%s4 + $0x18] sm:$0xff]
        %v498 = vld [vmem:[%s5] sm:$0xff]
        %v499 = vld [vmem:[%s5 + $0x8] sm:$0xff]
        %v500 = vld [vmem:[%s5 + $0x10] sm:$0xff]
        %v501 = vld [vmem:[%s5 + $0x18] sm:$0xff]
        %v502 = vld [vmem:[%s6] sm:$0xff]
        %v503 = vld [vmem:[%s6 + $0x8] sm:$0xff]
        %v504 = vld [vmem:[%s6 + $0x10] sm:$0xff]
        %v505 = vld [vmem:[%s6 + $0x18] sm:$0xff]
        %v506 = vld [vmem:[%s7] sm:$0xff]
        %v507 = vld [vmem:[%s7 + $0x8] sm:$0xff]
        %v508 = vld [vmem:[%s7 + $0x10] sm:$0xff]
        %v509 = vld [vmem:[%s7 + $0x18] sm:$0xff]
        %v510 = vld [vmem:[%s7 + $0x20] sm:$0xff]
        %v511 = vld [vmem:[%s7 + $0x28] sm:$0xff]
        %v512 = vld [vmem:[%s7 + $0x30] sm:$0xff]
        %v513 = vld [vmem:[%s7 + $0x38] sm:$0xff]
        %v514 = vld [vmem:[%s8] sm:$0xff]
        %v515 = vld [vmem:[%s8 + $0x8] sm:$0x1]
        %v516 = vld [vmem:[%s9] sm:$0x1]
        %v517 = vsel %vm430, %v465, 0.0
        %518 = vadd.xlane.f32.xlu0 %v517
        %v519 = vpop.xlane.xlu0 %518
        %v520 = vmul.f32 %v519, %v440
        %v521 = vmul.f32 %v465, %v465
        %v522 = vsel %vm430, %v521, 0.0
        %523 = vadd.xlane.f32.xlu0 %v522
        %v524 = vpop.xlane.xlu0 %523
        %v525 = vmul.f32 %v524, %v440
        %v526 = vmul.f32 %v520, %v520
        %v527 = vsub.f32 %v525, %v526
        %v528 = vsub.f32 %v465, %v520
        %v529 = vadd.f32 %v527, 1e-05
        %v530 = vrsqrt.pop %v529
        %v531 = vmul.f32 %v530, %v529
        %v532 = vmul.f32 %v531, %v530
        %v533 = vmul.f32 0.5, %v532
        %v534 = vsub.f32 1.5, %v533
        %v535 = vmul.f32 %v530, %v534
        %vm536 = vweird.f32 %v529
        %vm537 = vweird.f32 %v530
        %vm538 = vmor %vm536, %vm537
        %v539 = vsel %vm538, %v530, %v535
        %v540 = vmul.f32 %v528, %v539
        %v541 = vperm.slane %v514, 0
        %v542 = vmul.f32 %v540, %v541
        %v543 = vperm.slane %v514, 1
        %v544 = vadd.f32 %v542, %v543
        %vm545 = vcmask 261120
        %v547 = vsel %vm545, %v544, 0
        %549 = vmatpush.msra.mxu0 0.0
        %550 = vmatpush.msra.mxu0 0.0
        %551 = vmatpush.msra.mxu0 0.0
        %552 = vmatpush.msra.mxu0 0.0
        %553 = vmatpush.msra.mxu0 0.0
        %554 = vmatpush.msra.mxu0 0.0
        %555 = vmatpush.msra.mxu0 0.0
        %556 = vmatpush.msra.mxu0 0.0
        %557 = vmatpush.msra.mxu0 0.0
        %558 = vmatpush.msra.mxu0 0.0
        %559 = vmatpush.msra.mxu0 0.0
        %560 = vmatpush.msra.mxu0 0.0
        %561 = vmatpush.msra.mxu0 %v497
        %562 = vmatpush.msra.mxu0 %v496
        %563 = vmatpush.msra.mxu0 %v495
        %564 = vmatpush.msra.mxu0 %v494
        %565 = vmatmul.f32.gmra.mxu0 %v547
        %v566 = vpop.f32.mrf.mxu0
        %v567 = vadd.f32 0.0, %v566
        %568 = vdwg.mxu0
        %v569 = vperm.slane %v514, 2
        %v570 = vadd.f32 %v567, %v569
        %v571 = vmul.f32 %v570, 0.35355338
        %v572 = vperm.slane %v514, 3
        %574 = vrot.lane.b32.xlu0 %v572, 32
        %v575 = vpop.permute.xlu0 %574
        %v577 = vadd.f32 %v567, %v575
        %v578 = vperm.slane %v514, 4
        %580 = vrot.lane.b32.xlu0 %v578, 64
        %v581 = vpop.permute.xlu0 %580
        %v583 = vadd.f32 %v567, %v581
        %v585 = vrot.slane %v571, 3
        %v587 = vrot.slane %v571, 6
        %v589 = vrot.slane %v571, 1
        %v591 = vsel %vm488, %v571, %v585
        %v592 = vsel %vm490, %v585, %v587
        %v593 = vsel %vm492, %v592, %v589
        %v594 = vmul.f32 %v591, %v489
        %v595 = vmul.f32 %v593, %v493
        %v596 = vmul.f32 %v589, %v487
        %598 = vrot.lane.b32.xlu0 %v577, 96
        %v599 = vpop.permute.xlu0 %598
        %v601 = vsel %vm545, %v594, 0
        %v604 = vsel %vm545, %v595, 0
        %v607 = vsel %vm545, %v596, 0
        %v609 = vsel %vm545, %v599, 0
        %611 = vmatpush.xpose.msra.mxu0 0.0
        %612 = vmatpush.xpose.msra.mxu0 0.0
        %613 = vmatpush.xpose.msra.mxu0 0.0
        %614 = vmatpush.xpose.msra.mxu0 0.0
        %615 = vmatpush.xpose.msra.mxu0 0.0
        %616 = vmatpush.xpose.msra.mxu0 0.0
        %617 = vmatpush.xpose.msra.mxu0 0.0
        %618 = vmatpush.xpose.msra.mxu0 0.0
        %619 = vmatpush.xpose.msra.mxu0 0.0
        %620 = vmatpush.xpose.msra.mxu0 0.0
        %621 = vmatpush.xpose.msra.mxu0 0.0
        %622 = vmatpush.xpose.msra.mxu0 0.0
        %623 = vmatpush.xpose.msra.mxu0 0.0
        %624 = vmatpush.xpose.msra.mxu0 0.0
        %625 = vmatpush.xpose.msra.mxu0 0.0
        %626 = vmatpush.xpose.msra.mxu0 %v609
        %627 = vmatmul.f32.gmra.mxu0 %v601
        %v628 = vpop.f32.mrf.mxu0
        %v629 = vadd.f32 0.0, %v628
        %630 = vmatmul.f32.gmra.mxu0 %v604
        %v631 = vpop.f32.mrf.mxu0
        %v632 = vadd.f32 0.0, %v631
        %633 = vmatmul.f32.gmra.mxu0 %v607
        %v634 = vpop.f32.mrf.mxu0
        %v635 = vadd.f32 0.0, %v634
        %636 = vdwg.mxu0
        %vm637 = vcmask 39936
        %v638 = vsel %vm637, %v629, -inf
        %639 = vmax.xlane.f32.xlu0 %v638
        %v640 = vpop.xlane.xlu0 %639
        %v641 = vsel %vm637, %v632, -inf
        %642 = vmax.xlane.f32.xlu0 %v641
        %v643 = vpop.xlane.xlu0 %642
        %vm644 = vcmask 35840
        %v645 = vsel %vm644, %v635, -inf
        %646 = vmax.xlane.f32.xlu0 %v645
        %v647 = vpop.xlane.xlu0 %646
        %v648 = vsub.f32 %v629, %v640
        %v649 = vsub.f32 %v632, %v643
        %v650 = vsub.f32 %v635, %v647
        %v651 = vmul.f32 %v648, 1.442695
        %v652 = vpow.pop %v651
        %v653 = vmul.f32 %v649, 1.442695
        %v654 = vpow.pop %v653
        %v655 = vmul.f32 %v650, 1.442695
        %v656 = vpow.pop %v655
        %v657 = vsel %vm637, %v652, 0.0
        %658 = vadd.xlane.f32.xlu0 %v657
        %v659 = vpop.xlane.xlu0 %658
        %v660 = vsel %vm637, %v654, 0.0
        %661 = vadd.xlane.f32.xlu0 %v660
        %v662 = vpop.xlane.xlu0 %661
        %v663 = vsel %vm644, %v656, 0.0
        %664 = vadd.xlane.f32.xlu0 %v663
        %v665 = vpop.xlane.xlu0 %664
        %v666 = vrcp.pop %v659
        %v667 = vmul.f32 %v659, %v666
        %v668 = vsub.f32 1.0, %v667
        %v669 = vmul.f32 %v666, %v668
        %v670 = vadd.f32 %v666, %v669
        %vm671 = vweird.f32 %v659
        %vm672 = vweird.f32 %v666
        %vm673 = vmor %vm671, %vm672
        %v674 = vsel %vm673, %v666, %v670
        %v675 = vand.u32 2147483647, %v659
        %vm676 = vcmp.eq.f32.partialorder %v675, 8.507059e+37
        %v677 = vand.u32 %v659, 2147483648
        %v678 = vor.u32 1.1754944e-38, %v677
        %v679 = vsel %vm676, %v678, %v674
        %v680 = vmul.f32 %v652, %v679
        %v681 = vrcp.pop %v662
        %v682 = vmul.f32 %v662, %v681
        %v683 = vsub.f32 1.0, %v682
        %v684 = vmul.f32 %v681, %v683
        %v685 = vadd.f32 %v681, %v684
        %vm686 = vweird.f32 %v662
        %vm687 = vweird.f32 %v681
        %vm688 = vmor %vm686, %vm687
        %v689 = vsel %vm688, %v681, %v685
        %v690 = vand.u32 2147483647, %v662
        %vm691 = vcmp.eq.f32.partialorder %v690, 8.507059e+37
        %v692 = vand.u32 %v662, 2147483648
        %v693 = vor.u32 1.1754944e-38, %v692
        %v694 = vsel %vm691, %v693, %v689
        %v695 = vmul.f32 %v654, %v694
        %v696 = vrcp.pop %v665
        %v697 = vmul.f32 %v665, %v696
        %v698 = vsub.f32 1.0, %v697
        %v699 = vmul.f32 %v696, %v698
        %v700 = vadd.f32 %v696, %v699
        %vm701 = vweird.f32 %v665
        %vm702 = vweird.f32 %v696
        %vm703 = vmor %vm701, %vm702
        %v704 = vsel %vm703, %v696, %v700
        %v705 = vand.u32 2147483647, %v665
        %vm706 = vcmp.eq.f32.partialorder %v705, 8.507059e+37
        %v707 = vand.u32 %v665, 2147483648
        %v708 = vor.u32 1.1754944e-38, %v707
        %v709 = vsel %vm706, %v708, %v704
        %v710 = vmul.f32 %v656, %v709
        %712 = vrot.lane.b32.xlu0 %v583, 64
        %v713 = vpop.permute.xlu0 %712
        %v715 = vsel %vm637, %v680, 0
        %v718 = vsel %vm637, %v695, 0
        %v721 = vsel %vm637, %v710, 0
        %v723 = vsel %vm488, %v713, 0
        %725 = vmatpush.msra.mxu0 0.0
        %726 = vmatpush.msra.mxu0 0.0
        %727 = vmatpush.msra.mxu0 0.0
        %728 = vmatpush.msra.mxu0 0.0
        %729 = vmatpush.msra.mxu0 0.0
        %730 = vmatpush.msra.mxu0 0.0
        %731 = vmatpush.msra.mxu0 0.0
        %732 = vmatpush.msra.mxu0 0.0
        %733 = vmatpush.msra.mxu0 0.0
        %734 = vmatpush.msra.mxu0 0.0
        %735 = vmatpush.msra.mxu0 0.0
        %736 = vmatpush.msra.mxu0 0.0
        %737 = vmatpush.msra.mxu0 0.0
        %738 = vmatpush.msra.mxu0 0.0
        %739 = vmatpush.msra.mxu0 0.0
        %740 = vmatpush.msra.mxu0 %v723
        %741 = vmatmul.f32.gmra.mxu0 %v715
        %v742 = vpop.f32.mrf.mxu0
        %v743 = vadd.f32 0.0, %v742
        %744 = vmatmul.f32.gmra.mxu0 %v718
        %v745 = vpop.f32.mrf.mxu0
        %v746 = vadd.f32 0.0, %v745
        %747 = vmatmul.f32.gmra.mxu0 %v721
        %v748 = vpop.f32.mrf.mxu0
        %v749 = vadd.f32 0.0, %v748
        %750 = vdwg.mxu0
        %v751 = vmul.f32 %v743, %v489
        %v752 = vmul.f32 %v746, %v493
        %v753 = vmul.f32 %v749, %v487
        %vm756 = vcmask 1042432
        %v757 = vrot.slane %v751, 5
        %v758 = vrot.slane %v752, 5
        %v759 = vsel %vm756, %v757, %v758
        %v761 = vadd.f32 %v751, %v759
        %v762 = vrot.slane %v752, 2
        %v764 = vadd.f32 %v761, %v762
        %vm766 = vcmask 1040384
        %v767 = vrot.slane %v752, 7
        %v768 = vrot.slane %v753, 7
        %v769 = vsel %vm766, %v767, %v768
        %v771 = vadd.f32 %v764, %v769
        %v772 = vperm.slane %v514, 5
        %v774 = vsel %vm545, %v771, 0
        %776 = vmatpush.msra.mxu0 0.0
        %777 = vmatpush.msra.mxu0 0.0
        %778 = vmatpush.msra.mxu0 0.0
        %779 = vmatpush.msra.mxu0 0.0
        %780 = vmatpush.msra.mxu0 0.0
        %781 = vmatpush.msra.mxu0 0.0
        %782 = vmatpush.msra.mxu0 0.0
        %783 = vmatpush.msra.mxu0 0.0
        %784 = vmatpush.msra.mxu0 0.0
        %785 = vmatpush.msra.mxu0 0.0
        %786 = vmatpush.msra.mxu0 0.0
        %787 = vmatpush.msra.mxu0 0.0
        %788 = vmatpush.msra.mxu0 %v501
        %789 = vmatpush.msra.mxu0 %v500
        %790 = vmatpush.msra.mxu0 %v499
        %791 = vmatpush.msra.mxu0 %v498
        %792 = vmatmul.f32.gmra.mxu0 %v774
        %v793 = vpop.f32.mrf.mxu0
        %v794 = vadd.f32 %v772, %v793
        %795 = vdwg.mxu0
        %v796 = vadd.f32 %v465, %v794
        %v797 = vsel %vm430, %v796, 0.0
        %798 = vadd.xlane.f32.xlu0 %v797
        %v799 = vpop.xlane.xlu0 %798
        %v800 = vmul.f32 %v799, %v440
        %v801 = vmul.f32 %v796, %v796
        %v802 = vsel %vm430, %v801, 0.0
        %803 = vadd.xlane.f32.xlu0 %v802
        %v804 = vpop.xlane.xlu0 %803
        %v805 = vmul.f32 %v804, %v440
        %v806 = vmul.f32 %v800, %v800
        %v807 = vsub.f32 %v805, %v806
        %v808 = vsub.f32 %v796, %v800
        %v809 = vadd.f32 %v807, 1e-05
        %v810 = vrsqrt.pop %v809
        %v811 = vmul.f32 %v810, %v809
        %v812 = vmul.f32 %v811, %v810
        %v813 = vmul.f32 0.5, %v812
        %v814 = vsub.f32 1.5, %v813
        %v815 = vmul.f32 %v810, %v814
        %vm816 = vweird.f32 %v809
        %vm817 = vweird.f32 %v810
        %vm818 = vmor %vm816, %vm817
        %v819 = vsel %vm818, %v810, %v815
        %v820 = vmul.f32 %v808, %v819
        %v821 = vperm.slane %v514, 6
        %v822 = vmul.f32 %v820, %v821
        %v823 = vperm.slane %v514, 7
        %v824 = vadd.f32 %v822, %v823
        %v826 = vperm.slane %v516, 0
        %v829 = vsel %vm545, %v824, 0
        %831 = vmatpush.msra.mxu0 0.0
        %832 = vmatpush.msra.mxu0 0.0
        %833 = vmatpush.msra.mxu0 0.0
        %834 = vmatpush.msra.mxu0 0.0
        %835 = vmatpush.msra.mxu0 0.0
        %836 = vmatpush.msra.mxu0 0.0
        %837 = vmatpush.msra.mxu0 0.0
        %838 = vmatpush.msra.mxu0 0.0
        %839 = vmatpush.msra.mxu0 0.0
        %840 = vmatpush.msra.mxu0 0.0
        %841 = vmatpush.msra.mxu0 0.0
        %842 = vmatpush.msra.mxu0 0.0
        %843 = vmatpush.msra.mxu0 %v505
        %844 = vmatpush.msra.mxu0 %v504
        %845 = vmatpush.msra.mxu0 %v503
        %846 = vmatpush.msra.mxu0 %v502
        %847 = vmatmul.f32.gmra.mxu0 %v829
        %v848 = vpop.f32.mrf.mxu0
        %v849 = vadd.f32 %v826, %v848
        %850 = vdwg.mxu0
        %v851 = vmul.f32 %v849, 1.702
        %v852 = vxor.u32 %v851, 2147483648
        %v853 = vmul.f32 %v852, 1.442695
        %v854 = vpow.pop %v853
        %v855 = vadd.f32 %v854, 1.0
        %v856 = vrcp.pop %v855
        %v857 = vmul.f32 %v855, %v856
        %v858 = vsub.f32 1.0, %v857
        %v859 = vmul.f32 %v856, %v858
        %v860 = vadd.f32 %v856, %v859
        %vm861 = vweird.f32 %v855
        %vm862 = vweird.f32 %v856
        %vm863 = vmor %vm861, %vm862
        %v864 = vsel %vm863, %v856, %v860
        %v865 = vand.u32 2147483647, %v855
        %vm866 = vcmp.eq.f32.partialorder %v865, 8.507059e+37
        %v867 = vand.u32 %v855, 2147483648
        %v868 = vor.u32 1.1754944e-38, %v867
        %v869 = vsel %vm866, %v868, %v864
        %v870 = vmul.f32 1.0, %v869
        %v871 = vmul.f32 %v849, %v870
        %v872 = vperm.slane %v515, 0
        %v874 = vsel %vm385, %v871, 0
        %876 = vmatpush.msra.mxu0 0.0
        %877 = vmatpush.msra.mxu0 0.0
        %878 = vmatpush.msra.mxu0 0.0
        %879 = vmatpush.msra.mxu0 0.0
        %880 = vmatpush.msra.mxu0 0.0
        %881 = vmatpush.msra.mxu0 0.0
        %882 = vmatpush.msra.mxu0 0.0
        %883 = vmatpush.msra.mxu0 0.0
        %884 = vmatpush.msra.mxu0 %v513
        %885 = vmatpush.msra.mxu0 %v512
        %886 = vmatpush.msra.mxu0 %v511
        %887 = vmatpush.msra.mxu0 %v510
        %888 = vmatpush.msra.mxu0 %v509
        %889 = vmatpush.msra.mxu0 %v508
        %890 = vmatpush.msra.mxu0 %v507
        %891 = vmatpush.msra.mxu0 %v506
        %892 = vmatmul.f32.gmra.mxu0 %v874
        %v893 = vpop.f32.mrf.mxu0
        %v894 = vadd.f32 %v872, %v893
        %895 = vdwg.mxu0
        %v896 = vadd.f32 %v796, %v894
        %vm897 = vcmask 258049
        %898 = vst.msk [vmem:[%s352 - $0x1] sm:$0x1e] %vm897, %v896
        %s899 = sand.u32 %s247, 1
        %s900 = scalar_lea.sflag [#allocation3], %s899
        %s901 = sand.u32 %s247, 1
        %s902 = smul.addr %s901, 4
        %s903 = scalar_lea.vmem [#allocation2], %s902
        // Predicated region
        $region61: #{tpu_custom_call.1} parent=59 // pred_check
          %p904 = pneg %p257
        $region62: #{tpu_custom_call.1} parent=59 // pred_check_branch
          %906 = sbr.rel (%p904) target = $region64
        $region63: #{tpu_custom_call.1} parent=59 // pred_region
          %908 = vsyncadd %s900, 0
          %s909 = smul.addr %s24, 4
          %s910 = scalar_lea.hbm %s10, %s909
          %s912 = sshll.u32 %s903, 4
          %s913 = int_to_ptr.vmem [resolvable:$true] %s912
          %s914 = sshll.u32 %s910, 4
          %s915 = int_to_ptr.hbm [resolvable:$true] %s914
          %917 = dma.vmem_to_hbm [thread:$0]  %s913, 64, %s915, %s900
        $region64: #{tpu_custom_call.1} parent=59 // pred_fallthru
          _
      $region60: #{tpu_custom_call.1} parent=5 // pred_fallthru
        _
      %p918 = scmp.le.s32.totalorder 2, %s19
      // Predicated region
      $region65: #{tpu_custom_call.1} parent=5 // pred_check
        %p919 = pneg %p918
      $region66: #{tpu_custom_call.1} parent=5 // pred_check_branch
        %921 = sbr.rel (%p919) target = $region68
      $region67: #{tpu_custom_call.1} parent=5 // pred_region
        %s922 = ssub.s32 %s19, 2
        // Predicated region
        $region69: #{tpu_custom_call.1} parent=67 // pred_check
          %p923 = pneg %p263
        $region70: #{tpu_custom_call.1} parent=67 // pred_check_branch
          %925 = sbr.rel (%p923) target = $region72
        $region71: #{tpu_custom_call.1} parent=67 // pred_region
          %s926 = sand.u32 %s248, 1
          %s927 = scalar_lea.sflag [#allocation3], %s926
          %s928 = sand.u32 %s248, 1
          %s929 = smul.addr %s928, 4
          %s930 = scalar_lea.vmem [#allocation2], %s929
          %932 = dma.done %s927, 64
        $region72: #{tpu_custom_call.1} parent=67 // pred_fallthru
          _
      $region68: #{tpu_custom_call.1} parent=5 // pred_fallthru
        _
    $region6: #{tpu_custom_call.1} parent=1 // loop_footer
      %s23 = sadd.s32 1, %s19
    $region7: #{tpu_custom_call.1} parent=1 // loop_footer_branch
      %18 = sbr.rel target = $region3
    $region8: #{tpu_custom_call.1} parent=1 // loop_exit
      _
    %933 = vsyncpa [#allocation3], 1
    %s934 = scalar_lea.sflag [#allocation3], 1
    %935 = vsyncpa %s934, 1

</llo_original>
